<compile_context>
chip_gen: v5e
topology: v5e:2x2
jax: 0.10.0
libtpu: 0.0.40
codegen_flags: <defaults>
</compile_context>

<pallas_src>
import functools
import math

import jax
import jax.numpy as jnp
from jax.experimental import pallas as pl
from jax.experimental.pallas import tpu as pltpu

_LANES = 128
_SUBLANES = 8
_MAX_BLOCK_ROWS = 1024  # (1024, 128) f32 = 512 KiB per pipeline buffer


def _round_up(x, m):
    return (x + m - 1) // m * m


def _gan_loss_kernel(target_ref, x_ref, out_ref, acc_ref, *, use_l1):
    i = pl.program_id(1)

    @pl.when(i == 0)
    def _init():
        acc_ref[...] = jnp.zeros_like(acc_ref)

    x = x_ref[...].astype(jnp.float32)
    t = target_ref[0]  # scalar target (1.0 or 0.0) from SMEM

    if use_l1:
        # nn.L1Loss(): mean(|input - target|)
        per_elem = jnp.abs(x - t)
    else:
        # nn.BCEWithLogitsLoss(): mean(max(x,0) - x*t + log(1 + exp(-|x|)))
        per_elem = jnp.maximum(x, 0.0) - x * t + jnp.log1p(jnp.exp(-jnp.abs(x)))

    # Reduce the block to one vreg-shaped (8, 128) partial sum.  The reshape is
    # aligned with the (8, 128) tiling, so the axis-0 reduction is plain VPU
    # adds (no XLU work per grid step).
    rows = per_elem.shape[0]
    acc_ref[...] += per_elem.reshape(rows // _SUBLANES, _SUBLANES, _LANES).sum(axis=0)

    @pl.when(i == pl.num_programs(1) - 1)
    def _finalize():
        # Single cross-lane/sublane reduce, once per parallel slice.
        out_ref[0, 0] = jnp.sum(acc_ref[...])


def gan_loss(x, target_is_real, use_l1=True):
    """Pallas implementation of GANLoss.forward(input, target_is_real)."""
    n = x.size
    flat = x.reshape(-1)  # keep native dtype; cast happens inside the kernel

    rows_needed = pl.cdiv(n, _LANES)
    block_rows = min(_MAX_BLOCK_ROWS, _round_up(rows_needed, _SUBLANES))

    total_blocks = pl.cdiv(rows_needed, block_rows)
    # Split across the two TensorCores on v7x when there is enough work; on
    # single-TC chips the extra (size-2) parallel axis is just a sequential
    # outer loop with negligible cost.
    n_par = 2 if total_blocks >= 4 else 1
    total_blocks = _round_up(total_blocks, n_par)

    padded_rows = total_blocks * block_rows
    padded_n = padded_rows * _LANES
    pad = padded_n - n
    if pad:
        flat = jnp.pad(flat, (0, pad))
    mat = flat.reshape(padded_rows, _LANES)
    blocks_per_par = total_blocks // n_par

    target_val = jnp.float32(1.0 if target_is_real else 0.0)
    target_arr = jnp.full((1,), target_val, dtype=jnp.float32)

    def in_index_map(j, i):
        return (j * blocks_per_par + i, 0)

    kernel = functools.partial(_gan_loss_kernel, use_l1=use_l1)

    partials = pl.pallas_call(
        kernel,
        out_shape=jax.ShapeDtypeStruct((n_par, 1), jnp.float32),
        grid=(n_par, blocks_per_par),
        in_specs=[
            pl.BlockSpec(memory_space=pltpu.MemorySpace.SMEM),  # target scalar
            pl.BlockSpec((block_rows, _LANES), in_index_map),
        ],
        out_specs=pl.BlockSpec(
            (1, 1), lambda j, i: (j, 0), memory_space=pltpu.MemorySpace.SMEM
        ),
        scratch_shapes=[pltpu.VMEM((_SUBLANES, _LANES), jnp.float32)],
        compiler_params=pltpu.CompilerParams(
            dimension_semantics=("parallel", "arbitrary")
        ),
    )(target_arr, mat)

    total = jnp.sum(partials)
    # Zero padding contributes a constant per padded element:
    #   L1:  |0 - t| = t        BCE: max(0,0) - 0*t + log(1+exp(0)) = log(2)
    if use_l1:
        pad_correction = jnp.float32(pad) * target_val
    else:
        pad_correction = jnp.float32(pad * math.log(2.0))
    return (total - pad_correction) / jnp.float32(n)


if __name__ == "__main__":
    key = jax.random.PRNGKey(0)
    # Typical discriminator output: NCHW patch-GAN prediction map.
    x = jax.random.normal(key, (2, 4, 16, 16), dtype=jnp.float32)

    # --- L1 variant (use_l1=True, the module default) ---
    loss_real = jax.block_until_ready(gan_loss(x, target_is_real=True, use_l1=True))
    loss_fake = jax.block_until_ready(gan_loss(x, target_is_real=False, use_l1=True))

    ref_real = jnp.mean(jnp.abs(x - 1.0))
    ref_fake = jnp.mean(jnp.abs(x - 0.0))
    assert jnp.allclose(loss_real, ref_real, atol=1e-5, rtol=1e-5), (loss_real, ref_real)
    assert jnp.allclose(loss_fake, ref_fake, atol=1e-5, rtol=1e-5), (loss_fake, ref_fake)

    # --- BCE-with-logits variant (use_l1=False) ---
    loss_bce_r = jax.block_until_ready(gan_loss(x, target_is_real=True, use_l1=False))
    loss_bce_f = jax.block_until_ready(gan_loss(x, target_is_real=False, use_l1=False))
    t1 = jnp.ones_like(x)
    t0 = jnp.zeros_like(x)
    ref_bce_r = jnp.mean(jnp.maximum(x, 0.0) - x * t1 + jnp.log1p(jnp.exp(-jnp.abs(x))))
    ref_bce_f = jnp.mean(jnp.maximum(x, 0.0) - x * t0 + jnp.log1p(jnp.exp(-jnp.abs(x))))
    assert jnp.allclose(loss_bce_r, ref_bce_r, atol=1e-5, rtol=1e-5), (loss_bce_r, ref_bce_r)
    assert jnp.allclose(loss_bce_f, ref_bce_f, atol=1e-5, rtol=1e-5), (loss_bce_f, ref_bce_f)

    # --- Non-block-aligned size exercises the padding-correction path ---
    y = jax.random.normal(jax.random.PRNGKey(1), (3, 5, 7, 11), dtype=jnp.float32)
    loss_y = jax.block_until_ready(gan_loss(y, target_is_real=True, use_l1=True))
    ref_y = jnp.mean(jnp.abs(y - 1.0))
    assert jnp.allclose(loss_y, ref_y, atol=1e-5, rtol=1e-5), (loss_y, ref_y)

    print("KERNEL_OK")
</pallas_src>

<mosaic_0001>
module attributes {stable_mosaic.version = 11 : i64} {
  func.func @_gan_loss_kernel(%arg0: i32, %arg1: i32, %arg2: memref<1xf32, #tpu.memory_space<smem>>, %arg3: memref<16x128xf32, #tpu.memory_space<vmem>>, %arg4: memref<1x1xf32, #tpu.memory_space<smem>>, %arg5: memref<8x128xf32, #tpu.memory_space<vmem>>) attributes {dimension_semantics = [#tpu.dimension_semantics<parallel>, #tpu.dimension_semantics<arbitrary>], iteration_bounds = array<i64: 1, 1>, scalar_prefetch = 0 : i64, scratch_operands = 1 : i64, tpu.core_type = #tpu.core_type<tc>, window_params = [{transform_indices = @transform_0, window_bounds = array<i64: 1>}, {transform_indices = @transform_1, window_bounds = array<i64: 16, 128>}, {transform_indices = @transform_2, window_bounds = array<i64: 1, 1>}]} {
    %c0_i32 = arith.constant 0 : i32
    %0 = arith.cmpi eq, %arg1, %c0_i32 : i32
    %1 = arith.extui %0 : i1 to i32
    %c0_i32_0 = arith.constant 0 : i32
    %2 = arith.cmpi ne, %1, %c0_i32_0 : i32
    scf.if %2 {
      %cst_9 = arith.constant 0.000000e+00 : f32
      %16 = vector.broadcast %cst_9 : f32 to vector<8x128xf32>
      %c0_10 = arith.constant 0 : index
      %c0_11 = arith.constant 0 : index
      %17 = vector.load %arg5[%c0_10, %c0_11] : memref<8x128xf32, #tpu.memory_space<vmem>>, vector<8x128xf32>
      tpu.vector_store %arg5[%c0_10, %c0_11], %16 {strides = array<i32>} : memref<8x128xf32, #tpu.memory_space<vmem>>, vector<8x128xf32>,
    } else {
    }
    %c0 = arith.constant 0 : index
    %c0_1 = arith.constant 0 : index
    %3 = vector.load %arg3[%c0, %c0_1] : memref<16x128xf32, #tpu.memory_space<vmem>>, vector<16x128xf32>
    %c0_2 = arith.constant 0 : index
    %4 = memref.load %arg2[%c0_2] : memref<1xf32, #tpu.memory_space<smem>>
    %5 = vector.broadcast %4 : f32 to vector<16x128xf32>
    %6 = arith.subf %3, %5 : vector<16x128xf32>
    %7 = math.absf %6 : vector<16x128xf32>
    %c0_3 = arith.constant 0 : index
    %c0_4 = arith.constant 0 : index
    %8 = vector.load %arg5[%c0_3, %c0_4] : memref<8x128xf32, #tpu.memory_space<vmem>>, vector<8x128xf32>
    %9 = vector.shape_cast %7 : vector<16x128xf32> to vector<2x8x128xf32>
    %cst = arith.constant dense<0.000000e+00> : vector<8x128xf32>
    %10 = vector.multi_reduction <add>, %9, %cst [0] : vector<2x8x128xf32> to vector<8x128xf32>
    %11 = arith.addf %8, %10 : vector<8x128xf32>
    %c0_5 = arith.constant 0 : index
    %c0_6 = arith.constant 0 : index
    %12 = vector.load %arg5[%c0_5, %c0_6] : memref<8x128xf32, #tpu.memory_space<vmem>>, vector<8x128xf32>
    tpu.vector_store %arg5[%c0_5, %c0_6], %11 {strides = array<i32>} : memref<8x128xf32, #tpu.memory_space<vmem>>, vector<8x128xf32>,
    %c0_i32_7 = arith.constant 0 : i32
    %13 = arith.cmpi eq, %arg1, %c0_i32_7 : i32
    %14 = arith.extui %13 : i1 to i32
    %c0_i32_8 = arith.constant 0 : i32
    %15 = arith.cmpi ne, %14, %c0_i32_8 : i32
    scf.if %15 {
      %c0_9 = arith.constant 0 : index
      %c0_10 = arith.constant 0 : index
      %16 = vector.load %arg5[%c0_9, %c0_10] : memref<8x128xf32, #tpu.memory_space<vmem>>, vector<8x128xf32>
      %17 = vector.shape_cast %16 : vector<8x128xf32> to vector<1x8x128xf32>
      %cst_11 = arith.constant dense<0.000000e+00> : vector<1xf32>
      %18 = vector.multi_reduction <add>, %17, %cst_11 [1, 2] : vector<1x8x128xf32> to vector<1xf32>
      %19 = vector.shape_cast %18 : vector<1xf32> to vector<1x1x1xf32>
      %20 = vector.extract %19[0, 0, 0] : f32 from vector<1x1x1xf32>
      %c0_12 = arith.constant 0 : index
      %c0_13 = arith.constant 0 : index
      %21 = memref.load %arg4[%c0_12, %c0_13] : memref<1x1xf32, #tpu.memory_space<smem>>
      memref.store %20, %arg4[%c0_12, %c0_13] : memref<1x1xf32, #tpu.memory_space<smem>>
    } else {
    }
    return
  }
  func.func @transform_0(%arg0: i32, %arg1: i32) -> i32 {
    %c0_i32 = arith.constant 0 : i32
    %c0_i32_0 = arith.constant 0 : i32
    return %c0_i32 : i32
  }
  func.func @transform_1(%arg0: i32, %arg1: i32) -> (i32, i32) {
    %c1_i32 = arith.constant 1 : i32
    %0 = arith.muli %arg0, %c1_i32 : i32
    %1 = arith.addi %0, %arg1 : i32
    %c0_i32 = arith.constant 0 : i32
    %c0_i32_0 = arith.constant 0 : i32
    return %1, %c0_i32 : i32, i32
  }
  func.func @transform_2(%arg0: i32, %arg1: i32) -> (i32, i32) {
    %c0_i32 = arith.constant 0 : i32
    %c0_i32_0 = arith.constant 0 : i32
    return %arg0, %c0_i32 : i32, i32
  }
}

</mosaic_0001>

<llo_original>
// kernel: tpu_custom_call.1
$region0: #{tpu_custom_call.1}
  #allocation0 [shape = 'u32[]', space=smem, size = 0x4, offset = 0x4, fixed_abs, tag = 'smem constant byte address 0x4 - core index']
  #allocation1 [shape = 'u32[72,128]{1,0:T(1,128)}', space=vmem, size = 0x9000, scoped, tag = 'internal scratch']
  #allocation2 [shape = 'f32[8,128]{1,0:T(8,128)}', space=vmem, size = 0x1000, scoped, tag = 'scratch operand']
  #allocation3 [shape = 'f32[1]{0:T(128)S(6)}', space=smem, size = 0x200, scoped, tag = 'scoped memory for tpu_custom_call.1']
  %s0 = inlined_call_operand.<no memory space> [shape: f32[1], index: 0, kind: input, shape index: {}]
  %s1 = inlined_call_operand.hbm [shape: f32[16,128], index: 1, kind: input, shape index: {}]
  %s2 = inlined_call_operand.hbm [shape: f32[1,1], index: 2, kind: output, shape index: {}]
  %s3 = sld [smem:[#allocation0]]
  $region30: #{tpu_custom_call.1} parent=0
    _
  %s5 = ssub.s32 1, %s3
  %s6 = scalar_select 0, %s5, %s3
  %7 = sst [smem:[#allocation3]] %s0
  $region1: #{tpu_custom_call.1} parent=0
    #allocation4 [shape = 'u8[8192]{0}', space=vmem, size = 0x2000, scoped, tag = 'input window, operand 1, single buffered']
    #allocation5 [shape = 's32[1]{0}', space=sflag, size = 0x4, scoped, tag = 'scoped memory for tpu_custom_call.1']
    #allocation6 [shape = 's32[1]{0}', space=sflag, size = 0x4, scoped, tag = 'scoped memory for tpu_custom_call.1']
    #allocation7 [shape = 'u8[512]{0}', space=smem, size = 0x200, scoped, tag = 'output window, operand 0, single buffered']
    %8 = vsyncpa [#allocation5], 0
    %9 = vsyncpa [#allocation6], 0
    // Predicated region
    $region2: #{tpu_custom_call.1} parent=1 // pred_check
      _
    $region3: #{tpu_custom_call.1} parent=1 // pred_check_branch
      %11 = sbr.rel (0) target = $region5
    $region4: #{tpu_custom_call.1} parent=1 // pred_region
      _
    $region5: #{tpu_custom_call.1} parent=1 // pred_fallthru
      _
    // Predicated region
    $region6: #{tpu_custom_call.1} parent=1 // pred_check
      _
    $region7: #{tpu_custom_call.1} parent=1 // pred_check_branch
      %13 = sbr.rel (0) target = $region9
    $region8: #{tpu_custom_call.1} parent=1 // pred_region
      %s14 = sadd.s32 0, 0
      %s15 = smul.u32 2, %s14
      %17 = vsyncadd [#allocation5], 0
      %s18 = smul.addr %s15, 8
      %s19 = scalar_lea.hbm %s1, %s18
      %s20 = sshll.u32 %s19, 4
      %s21 = int_to_ptr.hbm [resolvable:$true] %s20
      %s22 = sshll.u32 [#allocation4], 4
      %s23 = int_to_ptr.vmem [resolvable:$true] %s22
      %28 = dma.hbm_to_vmem [thread:$0]  %s21, 256, %s23, [#allocation5], 128, 128, 8
    $region9: #{tpu_custom_call.1} parent=1 // pred_fallthru
      _
    // Predicated region
    $region10: #{tpu_custom_call.1} parent=1 // pred_check
      _
    $region11: #{tpu_custom_call.1} parent=1 // pred_check_branch
      %30 = sbr.rel (0) target = $region13
    $region12: #{tpu_custom_call.1} parent=1 // pred_region
      %32 = dma.done [#allocation5], 256
    $region13: #{tpu_custom_call.1} parent=1 // pred_fallthru
      _
    %s33 = sadd.s32 0, 0
    %s34 = smul.u32 2, %s33
    %p35 = scmp.eq.s32.totalorder 0, 0
    // Predicated region
    $region14: #{tpu_custom_call.1} parent=1 // pred_check
      %p36 = pneg %p35
    $region15: #{tpu_custom_call.1} parent=1 // pred_check_branch
      %38 = sbr.rel (%p36) target = $region17
    $region16: #{tpu_custom_call.1} parent=1 // pred_region
      %39 = vst [vmem:[#allocation2] sm:$0xff] 0.0
    $region17: #{tpu_custom_call.1} parent=1 // pred_fallthru
      _
    %v40 = vld [vmem:[#allocation4] sm:$0xff]
    %v41 = vld [vmem:[#allocation4 + $0x8] sm:$0xff]
    %s42 = sld [smem:[#allocation3]]
    %v43 = vstv %s42
    %v44 = vsub.f32 %v40, %v43
    %v45 = vsub.f32 %v41, %v43
    %v46 = vand.u32 2147483647, %v44
    %v47 = vand.u32 2147483647, %v45
    %v48 = vld [vmem:[#allocation2] sm:$0xff]
    %v49 = vadd.f32 %v46, %v47
    %v50 = vadd.f32 %v48, %v49
    %51 = vst [vmem:[#allocation2] sm:$0xff] %v50
    // Predicated region
    $region18: #{tpu_custom_call.1} parent=1 // pred_check
      %p52 = pneg %p35
    $region19: #{tpu_custom_call.1} parent=1 // pred_check_branch
      %54 = sbr.rel (%p52) target = $region21
    $region20: #{tpu_custom_call.1} parent=1 // pred_region
      %v55 = vld [vmem:[#allocation2] sm:$0xff]
      %56 = vadd.xlane.f32.xlu0 %v55
      %v57 = vpop.xlane.xlu0 %56
      %v58 = vrot.slane %v57, 4
      %v59 = vadd.f32 %v57, %v58
      %v60 = vrot.slane %v59, 2
      %v61 = vadd.f32 %v59, %v60
      %v62 = vrot.slane %v61, 1
      %v63 = vadd.f32 %v61, %v62
      %s64 = vtos %v63
      %s65 = scalar_lea.smem [#allocation7], 0
      %66 = sst [smem:[%s65]] %s64
    $region21: #{tpu_custom_call.1} parent=1 // pred_fallthru
      _
    // Predicated region
    $region22: #{tpu_custom_call.1} parent=1 // pred_check
      _
    $region23: #{tpu_custom_call.1} parent=1 // pred_check_branch
      %68 = sbr.rel (0) target = $region25
    $region24: #{tpu_custom_call.1} parent=1 // pred_region
      %70 = vsyncadd [#allocation6], 0
      %s72 = sshll.u32 %s2, 4
      %s73 = int_to_ptr.hbm [resolvable:$true] %s72
      %75 = dma.smem_to_hbm [#allocation7], 16, %s73, [#allocation6]
    $region25: #{tpu_custom_call.1} parent=1 // pred_fallthru
      _
    // Predicated region
    $region26: #{tpu_custom_call.1} parent=1 // pred_check
      _
    $region27: #{tpu_custom_call.1} parent=1 // pred_check_branch
      %77 = sbr.rel (0) target = $region29
    $region28: #{tpu_custom_call.1} parent=1 // pred_region
      %79 = dma.done [#allocation6], 16
    $region29: #{tpu_custom_call.1} parent=1 // pred_fallthru
      _
    %80 = sfence
    %81 = vsyncpa [#allocation5], 1
    %82 = vsyncpa [#allocation6], 1

</llo_original>
